<compile_context>
chip_gen: v5e
topology: v5e:2x2
jax: 0.10.0
libtpu: 0.0.40
codegen_flags: <defaults>
</compile_context>

<pallas_src>
import jax
import jax.numpy as jnp
from jax.experimental import pallas as pl
from jax.experimental.pallas import tpu as pltpu


def _round_up(x, m):
    return (x + m - 1) // m * m


def _ginv_rnn_kernel(s_ref, h0_ref, winv_ref, bias_ref, wh_hbm_ref,
                     out_ref, h_ref, wh_ref):
    """One grid step == one (batch tile b, time block t).

    s_ref     : (Tb, Nt)       time-major per-row feature sums for this block
    h0_ref    : (Nt, H)        initial hidden state for this batch tile
    winv_ref  : (1, H)         invariant-layer weight (per output unit)
    bias_ref  : (1, H)         fused bias  b_inv + b_h
    wh_hbm_ref: (H, H)  pl.ANY hidden Linear weight W_h^T, left in HBM
    out_ref   : (Tb, Nt, H)    time-major outputs for this block
    h_ref     : (Nt, H) f32    VMEM scratch carrying hidden state across blocks
    wh_ref    : (H, H)         VMEM scratch; single-buffered resident W_h^T
    """
    t_blk = pl.program_id(1)

    # NOTE: correctness relies on the time axis being the innermost
    # ("arbitrary", last) grid dimension so each batch tile's time blocks run
    # contiguously on one core with init at t_blk == 0.
    @pl.when(t_blk == 0)
    def _init():
        # Make W_h^T resident once per batch tile (single VMEM copy instead of
        # a double-buffered pipelined input) and (re)initialize the carry.
        pltpu.sync_copy(wh_hbm_ref, wh_ref)
        h_ref[...] = h0_ref[...]

    w_inv = winv_ref[...]                                   # (1, H)
    bias = bias_ref[...]                                    # (1, H)
    w_h = wh_ref[...]                                       # (H, H), resident

    # The invariant path depends only on the inputs, never on h, so hoist it
    # off the serial recurrence chain: one vectorized pass for the whole block.
    s_blk = s_ref[...]                                      # (Tb, Nt)
    inv_all = s_blk[:, :, None] * w_inv[None, :, :] + bias[None, :, :]  # (Tb,Nt,H)

    h = h_ref[...]                                          # (Nt, H) f32
    t_block = out_ref.shape[0]
    # Statically unrolled serial recurrence (Tb <= 64): W_h stays resident and
    # the per-step live set is tiny, so a full unroll gives the scheduler
    # visibility across the small per-step work.
    for i in range(t_block):
        hid = jnp.dot(h.astype(w_h.dtype), w_h,
                      preferred_element_type=jnp.float32)   # (Nt, H) on MXU
        h = jnp.maximum(inv_all[i] + hid, 0.0)              # ReLU
        out_ref[i] = h.astype(out_ref.dtype)                # dense (Nt, H) store
    h_ref[...] = h


def ginv_rnn_forward(x, h0, w_inv, b_inv, w_h, b_h, *, matmul_dtype=jnp.float32):
    """x: (N, L, D); h0: (N, H) or None; returns out: (N, L, H) float32.

    matmul_dtype: dtype of the h @ W_h^T MXU operands.  float32 keeps
    bit-near-f32 parity with the reference; bfloat16 is single-pass on the
    v6e/v7x MXU (~3x fewer issue cycles); accumulation is always float32.
    """
    N, L, D = x.shape
    H = w_h.shape[0]
    x = x.astype(jnp.float32)
    if h0 is None:
        h0 = jnp.zeros((N, H), jnp.float32)

    itemsize = jnp.dtype(matmul_dtype).itemsize

    # ---- tile sizes, VMEM-budget aware -------------------------------------
    H_pad = _round_up(H, 128)             # lane-dense stores + full MXU columns
    # n_tile is either round_up(N, 8) (== N_pad, "full dim" escape for the s
    # block) or exactly 128 (lane-dense / legal block width); cap 128 so the
    # batch axis yields >= 2 tiles for v7x megacore at larger N.
    n_tile = min(_round_up(N, 8), 128)
    t_block = min(_round_up(L, 8), 64)    # timesteps per grid step (unrolled)

    def vmem_estimate(nt, tb):
        f32 = 4
        out_blk = tb * nt * H_pad * f32
        return (2 * out_blk                      # double-buffered out block
                + out_blk                        # inv_all intermediate (VMEM)
                + 2 * tb * max(nt, 128) * f32    # double-buffered s block
                + 2 * nt * H_pad * f32           # double-buffered h0 block
                + 2 * 2 * 8 * H_pad * f32        # w_inv + fused bias (padded)
                + H_pad * H_pad * itemsize       # resident W_h^T scratch
                + nt * H_pad * f32)              # carried h scratch

    VMEM_BUDGET = 20 * 2**20   # conservative: fits v5e/v6e/v7x scoped limits
    while vmem_estimate(n_tile, t_block) > VMEM_BUDGET and t_block > 8:
        t_block = max(8, _round_up(t_block // 2, 8))

    N_pad = _round_up(N, n_tile)
    L_pad = _round_up(L, t_block)

    # ---- host-side prep (tiny compared to x / out) --------------------------
    # The invariant layer only needs the per-row feature sum; streaming s
    # instead of x cuts kernel input HBM traffic by D x.  s is stored
    # TIME-MAJOR (L, N) so in-kernel reads are dense with no transpose.
    s = jnp.sum(x, axis=-1)                                            # (N, L)
    s_tm = jnp.zeros((L_pad, N_pad), jnp.float32).at[:L, :N].set(jnp.transpose(s))

    h0_p = jnp.zeros((N_pad, H_pad), jnp.float32).at[:N, :H].set(
        h0.astype(jnp.float32))
    w_inv_p = jnp.zeros((1, H_pad), jnp.float32).at[0, :H].set(
        w_inv.astype(jnp.float32))
    bias_p = jnp.zeros((1, H_pad), jnp.float32).at[0, :H].set(
        (b_inv + b_h).astype(jnp.float32))
    # nn.Linear computes h @ W^T + b; store W^T (in, out), zero-padded so the
    # padded hidden units stay exactly 0 through the ReLU recurrence.  (Padded
    # batch rows evolve relu(bias) state; harmless, they are sliced off.)
    w_h_p = jnp.zeros((H_pad, H_pad), matmul_dtype).at[:H, :H].set(
        jnp.transpose(w_h).astype(matmul_dtype))

    grid = (N_pad // n_tile, L_pad // t_block)

    flops = 2 * N_pad * L_pad * H_pad * H_pad + 4 * N_pad * L_pad * H_pad
    bytes_accessed = (s_tm.size * 4 + h0_p.size * 4 + w_h_p.size * itemsize
                      + 2 * H_pad * 4 + L_pad * N_pad * H_pad * 4)
    vmem_limit = int(min(48 * 2**20,
                         max(32 * 2**20, 2 * vmem_estimate(n_tile, t_block))))

    out_tm = pl.pallas_call(
        _ginv_rnn_kernel,
        out_shape=jax.ShapeDtypeStruct((L_pad, N_pad, H_pad), jnp.float32),
        grid_spec=pltpu.PrefetchScalarGridSpec(
            num_scalar_prefetch=0,
            grid=grid,
            in_specs=[
                pl.BlockSpec((t_block, n_tile), lambda b, t: (t, b)),    # s (L,N)
                pl.BlockSpec((n_tile, H_pad), lambda b, t: (b, 0)),      # h0
                pl.BlockSpec((1, H_pad), lambda b, t: (0, 0)),           # w_inv
                pl.BlockSpec((1, H_pad), lambda b, t: (0, 0)),           # fused bias
                pl.BlockSpec(memory_space=pl.ANY),                       # W_h^T (HBM)
            ],
            out_specs=pl.BlockSpec((t_block, n_tile, H_pad),
                                   lambda b, t: (t, b, 0)),
            scratch_shapes=[
                pltpu.VMEM((n_tile, H_pad), jnp.float32),     # carried hidden state
                pltpu.VMEM((H_pad, H_pad), matmul_dtype),     # resident W_h^T
            ],
        ),
        compiler_params=pltpu.CompilerParams(
            # Batch tiles are independent -> megacore-parallel (v7x); the time
            # axis carries the recurrence -> sequential and innermost.
            dimension_semantics=("parallel", "arbitrary"),
            vmem_limit_bytes=vmem_limit,
        ),
        cost_estimate=pl.CostEstimate(flops=int(flops), transcendentals=0,
                                      bytes_accessed=int(bytes_accessed)),
    )(s_tm, h0_p, w_inv_p, bias_p, w_h_p)

    # Kernel-side layout is time-major so each step's store is a dense
    # (Nt, H) slab; one transpose here restores the module's batch-first API.
    return jnp.swapaxes(out_tm[:L, :N, :H], 0, 1)


def _reference_forward(x, h0, w_inv, b_inv, w_h, b_h):
    """Pure-JAX reference mirroring the PyTorch loop semantics."""
    def step(h, x_t):
        inv = jnp.sum(x_t, axis=-1, keepdims=True) * w_inv[None, :] + b_inv[None, :]
        hid = jnp.dot(h, w_h.T, precision=jax.lax.Precision.HIGHEST) + b_h[None, :]
        h_new = jnp.maximum(inv + hid, 0.0)
        return h_new, h_new

    _, out_tm = jax.lax.scan(step, h0, jnp.swapaxes(x, 0, 1))
    return jnp.swapaxes(out_tm, 0, 1)


if __name__ == "__main__":
    # Small shapes consistent with the module's forward (batch_first).
    N, L, D, H = 4, 8, 16, 32

    key = jax.random.PRNGKey(0)
    kx, k1, k2, k3, k4 = jax.random.split(key, 5)

    x = jax.random.normal(kx, (N, L, D), dtype=jnp.float32)
    h0 = jnp.zeros((N, H), dtype=jnp.float32)           # module default h_0

    w_inv = jax.random.normal(k1, (H,), dtype=jnp.float32) * 0.1   # invariant weight
    b_inv = jax.random.normal(k2, (H,), dtype=jnp.float32) * 0.1   # invariant bias
    w_h = jax.random.normal(k3, (H, H), dtype=jnp.float32) * 0.1   # nn.Linear weight (out, in)
    b_h = jax.random.normal(k4, (H,), dtype=jnp.float32) * 0.1     # nn.Linear bias

    ref = _reference_forward(x, h0, w_inv, b_inv, w_h, b_h)

    # f32-matmul path: bit-near parity with the reference.
    out = jax.block_until_ready(ginv_rnn_forward(x, h0, w_inv, b_inv, w_h, b_h))
    assert out.shape == (N, L, H)
    assert jnp.allclose(out, ref, atol=1e-4, rtol=1e-4), "f32 kernel mismatch vs reference"

    # bf16-matmul path (v6e/v7x fast path): looser tolerance, same structure.
    out_bf16 = jax.block_until_ready(
        ginv_rnn_forward(x, h0, w_inv, b_inv, w_h, b_h, matmul_dtype=jnp.bfloat16))
    assert out_bf16.shape == (N, L, H)
    assert jnp.allclose(out_bf16, ref, atol=5e-2, rtol=5e-2), "bf16 kernel drifted too far"

    print("KERNEL_OK")
</pallas_src>

<mosaic_0001>
module attributes {stable_mosaic.version = 11 : i64} {
  func.func @_ginv_rnn_kernel(%arg0: i32, %arg1: i32, %arg2: memref<8x8xf32, #tpu.memory_space<vmem>>, %arg3: memref<8x128xf32, #tpu.memory_space<vmem>>, %arg4: memref<1x128xf32, #tpu.memory_space<vmem>>, %arg5: memref<1x128xf32, #tpu.memory_space<vmem>>, %arg6: memref<128x128xf32, #tpu.memory_space<any>>, %arg7: memref<8x8x128xf32, #tpu.memory_space<vmem>>, %arg8: memref<8x128xf32, #tpu.memory_space<vmem>>, %arg9: memref<128x128xf32, #tpu.memory_space<vmem>>) attributes {dimension_semantics = [#tpu.dimension_semantics<parallel>, #tpu.dimension_semantics<arbitrary>], iteration_bounds = array<i64: 1, 1>, scalar_prefetch = 0 : i64, scratch_operands = 2 : i64, tpu.core_type = #tpu.core_type<tc>, window_params = [{transform_indices = @transform_0, window_bounds = array<i64: 8, 8>}, {transform_indices = @transform_1, window_bounds = array<i64: 8, 128>}, {pipeline_mode = #tpu.pipeline_mode<synchronous>, transform_indices = @transform_2, window_bounds = array<i64: 1, 128>}, {pipeline_mode = #tpu.pipeline_mode<synchronous>, transform_indices = @transform_3, window_bounds = array<i64: 1, 128>}, {}, {transform_indices = @transform_5, window_bounds = array<i64: 8, 8, 128>}]} {
    %c0_i32 = arith.constant 0 : i32
    %0 = arith.cmpi eq, %arg1, %c0_i32 : i32
    %1 = arith.extui %0 : i1 to i32
    %c0_i32_0 = arith.constant 0 : i32
    %2 = arith.cmpi ne, %1, %c0_i32_0 : i32
    scf.if %2 {
      "tpu.region"() ({
        %91 = tpu.sem_alloc : memref<!tpu.dma_semaphore, #tpu.memory_space<semaphore_mem>>
        tpu.enqueue_dma source(%arg6 : memref<128x128xf32, #tpu.memory_space<any>>) target(%arg9 : memref<128x128xf32, #tpu.memory_space<vmem>>) target_semaphore(%91 : memref<!tpu.dma_semaphore, #tpu.memory_space<semaphore_mem>>)
        tpu.wait_dma2 semaphore(%91 : memref<!tpu.dma_semaphore, #tpu.memory_space<semaphore_mem>>) src(%arg6 : memref<128x128xf32, #tpu.memory_space<any>>) dst(%arg9 : memref<128x128xf32, #tpu.memory_space<vmem>>)
        tpu.yield
      }) : () -> ()
      %c0_44 = arith.constant 0 : index
      %c0_45 = arith.constant 0 : index
      %89 = vector.load %arg3[%c0_44, %c0_45] : memref<8x128xf32, #tpu.memory_space<vmem>>, vector<8x128xf32>
      %c0_46 = arith.constant 0 : index
      %c0_47 = arith.constant 0 : index
      %90 = vector.load %arg8[%c0_46, %c0_47] : memref<8x128xf32, #tpu.memory_space<vmem>>, vector<8x128xf32>
      tpu.vector_store %arg8[%c0_46, %c0_47], %89 {strides = array<i32>} : memref<8x128xf32, #tpu.memory_space<vmem>>, vector<8x128xf32>,
    } else {
    }
    %c0 = arith.constant 0 : index
    %c0_1 = arith.constant 0 : index
    %3 = vector.load %arg4[%c0, %c0_1] : memref<1x128xf32, #tpu.memory_space<vmem>>, vector<1x128xf32>
    %c0_2 = arith.constant 0 : index
    %c0_3 = arith.constant 0 : index
    %4 = vector.load %arg5[%c0_2, %c0_3] : memref<1x128xf32, #tpu.memory_space<vmem>>, vector<1x128xf32>
    %c0_4 = arith.constant 0 : index
    %c0_5 = arith.constant 0 : index
    %5 = vector.load %arg9[%c0_4, %c0_5] : memref<128x128xf32, #tpu.memory_space<vmem>>, vector<128x128xf32>
    %c0_6 = arith.constant 0 : index
    %c0_7 = arith.constant 0 : index
    %6 = vector.load %arg2[%c0_6, %c0_7] : memref<8x8xf32, #tpu.memory_space<vmem>>, vector<8x8xf32>
    %7 = vector.shape_cast %6 : vector<8x8xf32> to vector<8x8x1xf32>
    %8 = vector.shape_cast %3 : vector<1x128xf32> to vector<1x1x128xf32>
    %9 = vector.broadcast %7 : vector<8x8x1xf32> to vector<8x8x128xf32>
    %10 = vector.broadcast %8 : vector<1x1x128xf32> to vector<8x8x128xf32>
    %11 = arith.mulf %9, %10 : vector<8x8x128xf32>
    %12 = vector.shape_cast %4 : vector<1x128xf32> to vector<1x1x128xf32>
    %13 = vector.broadcast %12 : vector<1x1x128xf32> to vector<8x8x128xf32>
    %14 = arith.addf %11, %13 : vector<8x8x128xf32>
    %c0_8 = arith.constant 0 : index
    %c0_9 = arith.constant 0 : index
    %15 = vector.load %arg8[%c0_8, %c0_9] : memref<8x128xf32, #tpu.memory_space<vmem>>, vector<8x128xf32>
    %cst = arith.constant dense<0.000000e+00> : vector<8x128xf32>
    %16 = tpu.matmul %15, %5, %cst {dimension_numbers = #tpu.dot_dimension_numbers<[1], [0], [0], [1], [0, 0, 1, 1], [], []>} : vector<8x128xf32>, vector<128x128xf32>, vector<8x128xf32> -> vector<8x128xf32>
    %17 = vector.extract_strided_slice %14 {offsets = [0, 0, 0], sizes = [1, 8, 128], strides = [1, 1, 1]} : vector<8x8x128xf32> to vector<1x8x128xf32>
    %18 = vector.shape_cast %17 : vector<1x8x128xf32> to vector<8x128xf32>
    %19 = arith.addf %18, %16 : vector<8x128xf32>
    %cst_10 = arith.constant 0.000000e+00 : f32
    %20 = vector.broadcast %cst_10 : f32 to vector<8x128xf32>
    %21 = arith.maximumf %19, %20 : vector<8x128xf32>
    %c0_11 = arith.constant 0 : index
    %c0_12 = arith.constant 0 : index
    %c0_13 = arith.constant 0 : index
    %22 = vector.load %arg7[%c0_11, %c0_12, %c0_13] : memref<8x8x128xf32, #tpu.memory_space<vmem>>, vector<1x8x128xf32>
    %23 = vector.shape_cast %22 : vector<1x8x128xf32> to vector<8x128xf32>
    %24 = vector.shape_cast %21 : vector<8x128xf32> to vector<1x8x128xf32>
    tpu.vector_store %arg7[%c0_11, %c0_12, %c0_13], %24 {strides = array<i32>} : memref<8x8x128xf32, #tpu.memory_space<vmem>>, vector<1x8x128xf32>,
    %cst_14 = arith.constant dense<0.000000e+00> : vector<8x128xf32>
    %25 = tpu.matmul %21, %5, %cst_14 {dimension_numbers = #tpu.dot_dimension_numbers<[1], [0], [0], [1], [0, 0, 1, 1], [], []>} : vector<8x128xf32>, vector<128x128xf32>, vector<8x128xf32> -> vector<8x128xf32>
    %26 = vector.extract_strided_slice %14 {offsets = [1, 0, 0], sizes = [1, 8, 128], strides = [1, 1, 1]} : vector<8x8x128xf32> to vector<1x8x128xf32>
    %27 = vector.shape_cast %26 : vector<1x8x128xf32> to vector<8x128xf32>
    %28 = arith.addf %27, %25 : vector<8x128xf32>
    %cst_15 = arith.constant 0.000000e+00 : f32
    %29 = vector.broadcast %cst_15 : f32 to vector<8x128xf32>
    %30 = arith.maximumf %28, %29 : vector<8x128xf32>
    %c1 = arith.constant 1 : index
    %c0_16 = arith.constant 0 : index
    %c0_17 = arith.constant 0 : index
    %31 = vector.load %arg7[%c1, %c0_16, %c0_17] : memref<8x8x128xf32, #tpu.memory_space<vmem>>, vector<1x8x128xf32>
    %32 = vector.shape_cast %31 : vector<1x8x128xf32> to vector<8x128xf32>
    %33 = vector.shape_cast %30 : vector<8x128xf32> to vector<1x8x128xf32>
    tpu.vector_store %arg7[%c1, %c0_16, %c0_17], %33 {strides = array<i32>} : memref<8x8x128xf32, #tpu.memory_space<vmem>>, vector<1x8x128xf32>,
    %cst_18 = arith.constant dense<0.000000e+00> : vector<8x128xf32>
    %34 = tpu.matmul %30, %5, %cst_18 {dimension_numbers = #tpu.dot_dimension_numbers<[1], [0], [0], [1], [0, 0, 1, 1], [], []>} : vector<8x128xf32>, vector<128x128xf32>, vector<8x128xf32> -> vector<8x128xf32>
    %35 = vector.extract_strided_slice %14 {offsets = [2, 0, 0], sizes = [1, 8, 128], strides = [1, 1, 1]} : vector<8x8x128xf32> to vector<1x8x128xf32>
    %36 = vector.shape_cast %35 : vector<1x8x128xf32> to vector<8x128xf32>
    %37 = arith.addf %36, %34 : vector<8x128xf32>
    %cst_19 = arith.constant 0.000000e+00 : f32
    %38 = vector.broadcast %cst_19 : f32 to vector<8x128xf32>
    %39 = arith.maximumf %37, %38 : vector<8x128xf32>
    %c2 = arith.constant 2 : index
    %c0_20 = arith.constant 0 : index
    %c0_21 = arith.constant 0 : index
    %40 = vector.load %arg7[%c2, %c0_20, %c0_21] : memref<8x8x128xf32, #tpu.memory_space<vmem>>, vector<1x8x128xf32>
    %41 = vector.shape_cast %40 : vector<1x8x128xf32> to vector<8x128xf32>
    %42 = vector.shape_cast %39 : vector<8x128xf32> to vector<1x8x128xf32>
    tpu.vector_store %arg7[%c2, %c0_20, %c0_21], %42 {strides = array<i32>} : memref<8x8x128xf32, #tpu.memory_space<vmem>>, vector<1x8x128xf32>,
    %cst_22 = arith.constant dense<0.000000e+00> : vector<8x128xf32>
    %43 = tpu.matmul %39, %5, %cst_22 {dimension_numbers = #tpu.dot_dimension_numbers<[1], [0], [0], [1], [0, 0, 1, 1], [], []>} : vector<8x128xf32>, vector<128x128xf32>, vector<8x128xf32> -> vector<8x128xf32>
    %44 = vector.extract_strided_slice %14 {offsets = [3, 0, 0], sizes = [1, 8, 128], strides = [1, 1, 1]} : vector<8x8x128xf32> to vector<1x8x128xf32>
    %45 = vector.shape_cast %44 : vector<1x8x128xf32> to vector<8x128xf32>
    %46 = arith.addf %45, %43 : vector<8x128xf32>
    %cst_23 = arith.constant 0.000000e+00 : f32
    %47 = vector.broadcast %cst_23 : f32 to vector<8x128xf32>
    %48 = arith.maximumf %46, %47 : vector<8x128xf32>
    %c3 = arith.constant 3 : index
    %c0_24 = arith.constant 0 : index
    %c0_25 = arith.constant 0 : index
    %49 = vector.load %arg7[%c3, %c0_24, %c0_25] : memref<8x8x128xf32, #tpu.memory_space<vmem>>, vector<1x8x128xf32>
    %50 = vector.shape_cast %49 : vector<1x8x128xf32> to vector<8x128xf32>
    %51 = vector.shape_cast %48 : vector<8x128xf32> to vector<1x8x128xf32>
    tpu.vector_store %arg7[%c3, %c0_24, %c0_25], %51 {strides = array<i32>} : memref<8x8x128xf32, #tpu.memory_space<vmem>>, vector<1x8x128xf32>,
    %cst_26 = arith.constant dense<0.000000e+00> : vector<8x128xf32>
    %52 = tpu.matmul %48, %5, %cst_26 {dimension_numbers = #tpu.dot_dimension_numbers<[1], [0], [0], [1], [0, 0, 1, 1], [], []>} : vector<8x128xf32>, vector<128x128xf32>, vector<8x128xf32> -> vector<8x128xf32>
    %53 = vector.extract_strided_slice %14 {offsets = [4, 0, 0], sizes = [1, 8, 128], strides = [1, 1, 1]} : vector<8x8x128xf32> to vector<1x8x128xf32>
    %54 = vector.shape_cast %53 : vector<1x8x128xf32> to vector<8x128xf32>
    %55 = arith.addf %54, %52 : vector<8x128xf32>
    %cst_27 = arith.constant 0.000000e+00 : f32
    %56 = vector.broadcast %cst_27 : f32 to vector<8x128xf32>
    %57 = arith.maximumf %55, %56 : vector<8x128xf32>
    %c4 = arith.constant 4 : index
    %c0_28 = arith.constant 0 : index
    %c0_29 = arith.constant 0 : index
    %58 = vector.load %arg7[%c4, %c0_28, %c0_29] : memref<8x8x128xf32, #tpu.memory_space<vmem>>, vector<1x8x128xf32>
    %59 = vector.shape_cast %58 : vector<1x8x128xf32> to vector<8x128xf32>
    %60 = vector.shape_cast %57 : vector<8x128xf32> to vector<1x8x128xf32>
    tpu.vector_store %arg7[%c4, %c0_28, %c0_29], %60 {strides = array<i32>} : memref<8x8x128xf32, #tpu.memory_space<vmem>>, vector<1x8x128xf32>,
    %cst_30 = arith.constant dense<0.000000e+00> : vector<8x128xf32>
    %61 = tpu.matmul %57, %5, %cst_30 {dimension_numbers = #tpu.dot_dimension_numbers<[1], [0], [0], [1], [0, 0, 1, 1], [], []>} : vector<8x128xf32>, vector<128x128xf32>, vector<8x128xf32> -> vector<8x128xf32>
    %62 = vector.extract_strided_slice %14 {offsets = [5, 0, 0], sizes = [1, 8, 128], strides = [1, 1, 1]} : vector<8x8x128xf32> to vector<1x8x128xf32>
    %63 = vector.shape_cast %62 : vector<1x8x128xf32> to vector<8x128xf32>
    %64 = arith.addf %63, %61 : vector<8x128xf32>
    %cst_31 = arith.constant 0.000000e+00 : f32
    %65 = vector.broadcast %cst_31 : f32 to vector<8x128xf32>
    %66 = arith.maximumf %64, %65 : vector<8x128xf32>
    %c5 = arith.constant 5 : index
    %c0_32 = arith.constant 0 : index
    %c0_33 = arith.constant 0 : index
    %67 = vector.load %arg7[%c5, %c0_32, %c0_33] : memref<8x8x128xf32, #tpu.memory_space<vmem>>, vector<1x8x128xf32>
    %68 = vector.shape_cast %67 : vector<1x8x128xf32> to vector<8x128xf32>
    %69 = vector.shape_cast %66 : vector<8x128xf32> to vector<1x8x128xf32>
    tpu.vector_store %arg7[%c5, %c0_32, %c0_33], %69 {strides = array<i32>} : memref<8x8x128xf32, #tpu.memory_space<vmem>>, vector<1x8x128xf32>,
    %cst_34 = arith.constant dense<0.000000e+00> : vector<8x128xf32>
    %70 = tpu.matmul %66, %5, %cst_34 {dimension_numbers = #tpu.dot_dimension_numbers<[1], [0], [0], [1], [0, 0, 1, 1], [], []>} : vector<8x128xf32>, vector<128x128xf32>, vector<8x128xf32> -> vector<8x128xf32>
    %71 = vector.extract_strided_slice %14 {offsets = [6, 0, 0], sizes = [1, 8, 128], strides = [1, 1, 1]} : vector<8x8x128xf32> to vector<1x8x128xf32>
    %72 = vector.shape_cast %71 : vector<1x8x128xf32> to vector<8x128xf32>
    %73 = arith.addf %72, %70 : vector<8x128xf32>
    %cst_35 = arith.constant 0.000000e+00 : f32
    %74 = vector.broadcast %cst_35 : f32 to vector<8x128xf32>
    %75 = arith.maximumf %73, %74 : vector<8x128xf32>
    %c6 = arith.constant 6 : index
    %c0_36 = arith.constant 0 : index
    %c0_37 = arith.constant 0 : index
    %76 = vector.load %arg7[%c6, %c0_36, %c0_37] : memref<8x8x128xf32, #tpu.memory_space<vmem>>, vector<1x8x128xf32>
    %77 = vector.shape_cast %76 : vector<1x8x128xf32> to vector<8x128xf32>
    %78 = vector.shape_cast %75 : vector<8x128xf32> to vector<1x8x128xf32>
    tpu.vector_store %arg7[%c6, %c0_36, %c0_37], %78 {strides = array<i32>} : memref<8x8x128xf32, #tpu.memory_space<vmem>>, vector<1x8x128xf32>,
    %cst_38 = arith.constant dense<0.000000e+00> : vector<8x128xf32>
    %79 = tpu.matmul %75, %5, %cst_38 {dimension_numbers = #tpu.dot_dimension_numbers<[1], [0], [0], [1], [0, 0, 1, 1], [], []>} : vector<8x128xf32>, vector<128x128xf32>, vector<8x128xf32> -> vector<8x128xf32>
    %80 = vector.extract_strided_slice %14 {offsets = [7, 0, 0], sizes = [1, 8, 128], strides = [1, 1, 1]} : vector<8x8x128xf32> to vector<1x8x128xf32>
    %81 = vector.shape_cast %80 : vector<1x8x128xf32> to vector<8x128xf32>
    %82 = arith.addf %81, %79 : vector<8x128xf32>
    %cst_39 = arith.constant 0.000000e+00 : f32
    %83 = vector.broadcast %cst_39 : f32 to vector<8x128xf32>
    %84 = arith.maximumf %82, %83 : vector<8x128xf32>
    %c7 = arith.constant 7 : index
    %c0_40 = arith.constant 0 : index
    %c0_41 = arith.constant 0 : index
    %85 = vector.load %arg7[%c7, %c0_40, %c0_41] : memref<8x8x128xf32, #tpu.memory_space<vmem>>, vector<1x8x128xf32>
    %86 = vector.shape_cast %85 : vector<1x8x128xf32> to vector<8x128xf32>
    %87 = vector.shape_cast %84 : vector<8x128xf32> to vector<1x8x128xf32>
    tpu.vector_store %arg7[%c7, %c0_40, %c0_41], %87 {strides = array<i32>} : memref<8x8x128xf32, #tpu.memory_space<vmem>>, vector<1x8x128xf32>,
    %c0_42 = arith.constant 0 : index
    %c0_43 = arith.constant 0 : index
    %88 = vector.load %arg8[%c0_42, %c0_43] : memref<8x128xf32, #tpu.memory_space<vmem>>, vector<8x128xf32>
    tpu.vector_store %arg8[%c0_42, %c0_43], %84 {strides = array<i32>} : memref<8x128xf32, #tpu.memory_space<vmem>>, vector<8x128xf32>,
    return
  }
  func.func @transform_0(%arg0: i32, %arg1: i32) -> (i32, i32) {
    %c0_i32 = arith.constant 0 : i32
    return %arg1, %arg0 : i32, i32
  }
  func.func @transform_1(%arg0: i32, %arg1: i32) -> (i32, i32) {
    %c0_i32 = arith.constant 0 : i32
    %c0_i32_0 = arith.constant 0 : i32
    return %arg0, %c0_i32 : i32, i32
  }
  func.func @transform_2(%arg0: i32, %arg1: i32) -> (i32, i32) {
    %c0_i32 = arith.constant 0 : i32
    %c0_i32_0 = arith.constant 0 : i32
    %c0_i32_1 = arith.constant 0 : i32
    return %c0_i32, %c0_i32_0 : i32, i32
  }
  func.func @transform_3(%arg0: i32, %arg1: i32) -> (i32, i32) {
    %c0_i32 = arith.constant 0 : i32
    %c0_i32_0 = arith.constant 0 : i32
    %c0_i32_1 = arith.constant 0 : i32
    return %c0_i32, %c0_i32_0 : i32, i32
  }
  func.func @transform_5(%arg0: i32, %arg1: i32) -> (i32, i32, i32) {
    %c0_i32 = arith.constant 0 : i32
    %c0_i32_0 = arith.constant 0 : i32
    return %arg1, %arg0, %c0_i32 : i32, i32, i32
  }
}

</mosaic_0001>

<llo_original>
// kernel: tpu_custom_call.1
$region0: #{tpu_custom_call.1}
  #allocation0 [shape = 'u32[]', space=smem, size = 0x4, offset = 0x4, fixed_abs, tag = 'smem constant byte address 0x4 - core index']
  #allocation1 [shape = 'u32[72,128]{1,0:T(1,128)}', space=vmem, size = 0x9000, scoped, tag = 'internal scratch']
  #allocation2 [shape = 'f32[8,128]{1,0:T(8,128)}', space=vmem, size = 0x1000, scoped, tag = 'scratch operand']
  #allocation3 [shape = 'f32[128,128]{1,0:T(8,128)}', space=vmem, size = 0x10000, scoped, tag = 'scratch operand']
  #allocation11 [shape = 's32[]', space=sflag, size = 0x4, offset = 0, fixed_abs, tag = 'sflag constant byte address 0x0 - dummy sync flag']
  #allocation12 [shape = 's32[]', space=sflag, size = 0x4, offset = 0, fixed_abs, tag = 'sflag constant byte address 0x0 - dummy sync flag']
  #allocation13 [shape = 'u32[]', space=smem, size = 0x4, offset = 0x44, fixed_abs, tag = 'smem constant byte address 0x44 - assertion arg 0']
  #allocation14 [shape = 'u32[]', space=smem, size = 0x4, offset = 0x48, fixed_abs, tag = 'smem constant byte address 0x48 - assertion arg 1']
  %s0 = inlined_call_operand.hbm [shape: f32[8,8], index: 0, kind: input, shape index: {}]
  %s1 = inlined_call_operand.hbm [shape: f32[8,128], index: 1, kind: input, shape index: {}]
  %s2 = inlined_call_operand.vmem [shape: f32[1,128], index: 2, kind: input, shape index: {}]
  %s3 = inlined_call_operand.vmem [shape: f32[1,128], index: 3, kind: input, shape index: {}]
  %s4 = inlined_call_operand.hbm [shape: f32[128,128], index: 4, kind: input, shape index: {}]
  %s5 = inlined_call_operand.hbm [shape: f32[8,8,128], index: 5, kind: output, shape index: {}]
  %s6 = sld [smem:[#allocation0]]
  $region43: #{tpu_custom_call.1} parent=0
    _
  %s8 = ssub.s32 1, %s6
  %s9 = scalar_select 0, %s8, %s6
  $region1: #{tpu_custom_call.1} parent=0
    #allocation4 [shape = 'u8[4096]{0}', space=vmem, size = 0x1000, scoped, tag = 'input window, operand 0, single buffered']
    #allocation5 [shape = 's32[1]{0}', space=sflag, size = 0x4, scoped, tag = 'scoped memory for tpu_custom_call.1']
    #allocation6 [shape = 's32[1]{0}', space=sflag, size = 0x4, scoped, tag = 'scoped memory for tpu_custom_call.1']
    #allocation7 [shape = 'u8[4096]{0}', space=vmem, size = 0x1000, scoped, tag = 'input window, operand 1, single buffered']
    #allocation8 [shape = 's32[1]{0}', space=sflag, size = 0x4, scoped, tag = 'scoped memory for tpu_custom_call.1']
    #allocation9 [shape = 'u8[32768]{0}', space=vmem, size = 0x8000, scoped, tag = 'output window, operand 0, single buffered']
    %10 = vsyncpa [#allocation5], 0
    %11 = vsyncpa [#allocation8], 0
    %12 = vsyncpa [#allocation6], 0
    // Predicated region
    $region2: #{tpu_custom_call.1} parent=1 // pred_check
      _
    $region3: #{tpu_custom_call.1} parent=1 // pred_check_branch
      %14 = sbr.rel (0) target = $region5
    $region4: #{tpu_custom_call.1} parent=1 // pred_region
      %16 = vsyncadd [#allocation5], 0
      %s18 = sshll.u32 %s0, 4
      %s19 = int_to_ptr.hbm [resolvable:$true] %s18
      %s20 = sshll.u32 [#allocation4], 4
      %s21 = int_to_ptr.vmem [resolvable:$true] %s20
      %23 = dma.hbm_to_vmem [thread:$0]  %s19, 128, %s21, [#allocation5]
    $region5: #{tpu_custom_call.1} parent=1 // pred_fallthru
      _
    // Predicated region
    $region6: #{tpu_custom_call.1} parent=1 // pred_check
      _
    $region7: #{tpu_custom_call.1} parent=1 // pred_check_branch
      %25 = sbr.rel (0) target = $region9
    $region8: #{tpu_custom_call.1} parent=1 // pred_region
      %27 = vsyncadd [#allocation8], 0
      %s29 = sshll.u32 %s1, 4
      %s30 = int_to_ptr.hbm [resolvable:$true] %s29
      %s31 = sshll.u32 [#allocation7], 4
      %s32 = int_to_ptr.vmem [resolvable:$true] %s31
      %34 = dma.hbm_to_vmem [thread:$0]  %s30, 128, %s32, [#allocation8]
    $region9: #{tpu_custom_call.1} parent=1 // pred_fallthru
      _
    // Predicated region
    $region10: #{tpu_custom_call.1} parent=1 // pred_check
      _
    $region11: #{tpu_custom_call.1} parent=1 // pred_check_branch
      %36 = sbr.rel (0) target = $region13
    $region12: #{tpu_custom_call.1} parent=1 // pred_region
      _
    $region13: #{tpu_custom_call.1} parent=1 // pred_fallthru
      _
    // Predicated region
    $region14: #{tpu_custom_call.1} parent=1 // pred_check
      _
    $region15: #{tpu_custom_call.1} parent=1 // pred_check_branch
      %38 = sbr.rel (0) target = $region17
    $region16: #{tpu_custom_call.1} parent=1 // pred_region
      _
    $region17: #{tpu_custom_call.1} parent=1 // pred_fallthru
      _
    // Predicated region
    $region18: #{tpu_custom_call.1} parent=1 // pred_check
      _
    $region19: #{tpu_custom_call.1} parent=1 // pred_check_branch
      %40 = sbr.rel (0) target = $region21
    $region20: #{tpu_custom_call.1} parent=1 // pred_region
      %42 = dma.done [#allocation5], 128
    $region21: #{tpu_custom_call.1} parent=1 // pred_fallthru
      _
    // Predicated region
    $region22: #{tpu_custom_call.1} parent=1 // pred_check
      _
    $region23: #{tpu_custom_call.1} parent=1 // pred_check_branch
      %44 = sbr.rel (0) target = $region25
    $region24: #{tpu_custom_call.1} parent=1 // pred_region
      %46 = dma.done [#allocation8], 128
    $region25: #{tpu_custom_call.1} parent=1 // pred_fallthru
      _
    %p47 = scmp.eq.s32.totalorder 0, 0
    // Predicated region
    $region26: #{tpu_custom_call.1} parent=1 // pred_check
      %p48 = pneg %p47
    $region27: #{tpu_custom_call.1} parent=1 // pred_check_branch
      %50 = sbr.rel (%p48) target = $region29
    $region28: #{tpu_custom_call.1} parent=1 // pred_region
      $region30: #{tpu_custom_call.1} parent=28
        #allocation10 [shape = 's32[1]{0}', space=sflag, size = 0x4, scoped, tag = 'scoped memory for tpu_custom_call.1']
        // Predicated region
        $region31: #{tpu_custom_call.1} parent=30 // pred_check
          _
        $region32: #{tpu_custom_call.1} parent=30 // pred_check_branch
          %52 = sbr.rel target = $region34
        $region33: #{tpu_custom_call.1} parent=30 // pred_region
          %53 = sst [smem:[#allocation13]] [#allocation12]
          %54 = sst [smem:[#allocation14]] [#allocation11]
        $region34: #{tpu_custom_call.1} parent=30 // pred_fallthru
          _
        %56 = shalt.err (0)
        %s58 = sshll.u32 %s4, 4
        %s59 = int_to_ptr.hbm [resolvable:$true] %s58
        %s60 = sshll.u32 [#allocation3], 4
        %s61 = int_to_ptr.vmem [resolvable:$true] %s60
        %63 = dma.hbm_to_vmem [thread:$0]  %s59, 2048, %s61, [#allocation10]
        %s64 = smul.u32 128, 1
        %s65 = sshll.u32 %s64, 4
        %66 = dma.done [#allocation10], %s65
      %v67 = vld [vmem:[#allocation7] sm:$0xff]
      %68 = vst [vmem:[#allocation2] sm:$0xff] %v67
    $region29: #{tpu_custom_call.1} parent=1 // pred_fallthru
      _
    %v69 = vld [vmem:[%s2] sm:$0x1]
    %v70 = vld [vmem:[%s3] sm:$0x1]
    %v71 = vld [vmem:[#allocation3] sm:$0xff]
    %v72 = vld [vmem:[#allocation3 + $0x8] sm:$0xff]
    %v73 = vld [vmem:[#allocation3 + $0x10] sm:$0xff]
    %v74 = vld [vmem:[#allocation3 + $0x18] sm:$0xff]
    %v75 = vld [vmem:[#allocation3 + $0x20] sm:$0xff]
    %v76 = vld [vmem:[#allocation3 + $0x28] sm:$0xff]
    %v77 = vld [vmem:[#allocation3 + $0x30] sm:$0xff]
    %v78 = vld [vmem:[#allocation3 + $0x38] sm:$0xff]
    %v79 = vld [vmem:[#allocation3 + $0x40] sm:$0xff]
    %v80 = vld [vmem:[#allocation3 + $0x48] sm:$0xff]
    %v81 = vld [vmem:[#allocation3 + $0x50] sm:$0xff]
    %v82 = vld [vmem:[#allocation3 + $0x58] sm:$0xff]
    %v83 = vld [vmem:[#allocation3 + $0x60] sm:$0xff]
    %v84 = vld [vmem:[#allocation3 + $0x68] sm:$0xff]
    %v85 = vld [vmem:[#allocation3 + $0x70] sm:$0xff]
    %v86 = vld [vmem:[#allocation3 + $0x78] sm:$0xff]
    %v87 = vld [vmem:[#allocation4] sm:$0xff]
    %v88 = vperm.slane %v87, 0
    %v89 = vlaneseq
    %v90 = vshrl.u32 %v89, 7
    %92 = vset.pattern.permute.xlu0 %v90
    %93 = vperm.xlu0 %92, %v88
    %v94 = vpop.permute.xlu0 %93
    %v95 = vperm.slane %v87, 1
    %v96 = vlaneseq
    %v97 = vshrl.u32 %v96, 7
    %99 = vset.pattern.permute.xlu0 %v97
    %100 = vperm.xlu0 %99, %v95
    %v101 = vpop.permute.xlu0 %100
    %v102 = vperm.slane %v87, 2
    %v103 = vlaneseq
    %v104 = vshrl.u32 %v103, 7
    %106 = vset.pattern.permute.xlu0 %v104
    %107 = vperm.xlu0 %106, %v102
    %v108 = vpop.permute.xlu0 %107
    %v109 = vperm.slane %v87, 3
    %v110 = vlaneseq
    %v111 = vshrl.u32 %v110, 7
    %113 = vset.pattern.permute.xlu0 %v111
    %114 = vperm.xlu0 %113, %v109
    %v115 = vpop.permute.xlu0 %114
    %v116 = vperm.slane %v87, 4
    %v117 = vlaneseq
    %v118 = vshrl.u32 %v117, 7
    %120 = vset.pattern.permute.xlu0 %v118
    %121 = vperm.xlu0 %120, %v116
    %v122 = vpop.permute.xlu0 %121
    %v123 = vperm.slane %v87, 5
    %v124 = vlaneseq
    %v125 = vshrl.u32 %v124, 7
    %127 = vset.pattern.permute.xlu0 %v125
    %128 = vperm.xlu0 %127, %v123
    %v129 = vpop.permute.xlu0 %128
    %v130 = vperm.slane %v87, 6
    %v131 = vlaneseq
    %v132 = vshrl.u32 %v131, 7
    %134 = vset.pattern.permute.xlu0 %v132
    %135 = vperm.xlu0 %134, %v130
    %v136 = vpop.permute.xlu0 %135
    %v137 = vperm.slane %v87, 7
    %v138 = vlaneseq
    %v139 = vshrl.u32 %v138, 7
    %141 = vset.pattern.permute.xlu0 %v139
    %142 = vperm.xlu0 %141, %v137
    %v143 = vpop.permute.xlu0 %142
    %v145 = vperm.slane %v69, 0
    %v147 = vmul.f32 %v94, %v145
    %v148 = vmul.f32 %v101, %v145
    %v149 = vmul.f32 %v108, %v145
    %v150 = vmul.f32 %v115, %v145
    %v151 = vmul.f32 %v122, %v145
    %v152 = vmul.f32 %v129, %v145
    %v153 = vmul.f32 %v136, %v145
    %v154 = vmul.f32 %v143, %v145
    %v156 = vperm.slane %v70, 0
    %v158 = vadd.f32 %v147, %v156
    %v159 = vadd.f32 %v148, %v156
    %v160 = vadd.f32 %v149, %v156
    %v161 = vadd.f32 %v150, %v156
    %v162 = vadd.f32 %v151, %v156
    %v163 = vadd.f32 %v152, %v156
    %v164 = vadd.f32 %v153, %v156
    %v165 = vadd.f32 %v154, %v156
    %v166 = vld [vmem:[#allocation2] sm:$0xff]
    %167 = vmatpush.msra.mxu0 %v86
    %168 = vmatpush.msra.mxu0 %v85
    %169 = vmatpush.msra.mxu0 %v84
    %170 = vmatpush.msra.mxu0 %v83
    %171 = vmatpush.msra.mxu0 %v82
    %172 = vmatpush.msra.mxu0 %v81
    %173 = vmatpush.msra.mxu0 %v80
    %174 = vmatpush.msra.mxu0 %v79
    %175 = vmatpush.msra.mxu0 %v78
    %176 = vmatpush.msra.mxu0 %v77
    %177 = vmatpush.msra.mxu0 %v76
    %178 = vmatpush.msra.mxu0 %v75
    %179 = vmatpush.msra.mxu0 %v74
    %180 = vmatpush.msra.mxu0 %v73
    %181 = vmatpush.msra.mxu0 %v72
    %182 = vmatpush.msra.mxu0 %v71
    %183 = vmatmul.f32.gmra.mxu0 %v166
    %v184 = vpop.f32.mrf.mxu0
    %v185 = vadd.f32 0.0, %v184
    %186 = vdwg.mxu0
    %v187 = vadd.f32 %v158, %v185
    %v188 = vmax.f32 %v187, 0.0
    %189 = vst [vmem:[#allocation9] sm:$0xff] %v188
    %190 = vmatpush.msra.mxu0 %v86
    %191 = vmatpush.msra.mxu0 %v85
    %192 = vmatpush.msra.mxu0 %v84
    %193 = vmatpush.msra.mxu0 %v83
    %194 = vmatpush.msra.mxu0 %v82
    %195 = vmatpush.msra.mxu0 %v81
    %196 = vmatpush.msra.mxu0 %v80
    %197 = vmatpush.msra.mxu0 %v79
    %198 = vmatpush.msra.mxu0 %v78
    %199 = vmatpush.msra.mxu0 %v77
    %200 = vmatpush.msra.mxu0 %v76
    %201 = vmatpush.msra.mxu0 %v75
    %202 = vmatpush.msra.mxu0 %v74
    %203 = vmatpush.msra.mxu0 %v73
    %204 = vmatpush.msra.mxu0 %v72
    %205 = vmatpush.msra.mxu0 %v71
    %206 = vmatmul.f32.gmra.mxu0 %v188
    %v207 = vpop.f32.mrf.mxu0
    %v208 = vadd.f32 0.0, %v207
    %209 = vdwg.mxu0
    %v210 = vadd.f32 %v159, %v208
    %v211 = vmax.f32 %v210, 0.0
    %s212 = scalar_lea.vmem [#allocation9], 8
    %213 = vst [vmem:[%s212] sm:$0xff] %v211
    %214 = vmatpush.msra.mxu0 %v86
    %215 = vmatpush.msra.mxu0 %v85
    %216 = vmatpush.msra.mxu0 %v84
    %217 = vmatpush.msra.mxu0 %v83
    %218 = vmatpush.msra.mxu0 %v82
    %219 = vmatpush.msra.mxu0 %v81
    %220 = vmatpush.msra.mxu0 %v80
    %221 = vmatpush.msra.mxu0 %v79
    %222 = vmatpush.msra.mxu0 %v78
    %223 = vmatpush.msra.mxu0 %v77
    %224 = vmatpush.msra.mxu0 %v76
    %225 = vmatpush.msra.mxu0 %v75
    %226 = vmatpush.msra.mxu0 %v74
    %227 = vmatpush.msra.mxu0 %v73
    %228 = vmatpush.msra.mxu0 %v72
    %229 = vmatpush.msra.mxu0 %v71
    %230 = vmatmul.f32.gmra.mxu0 %v211
    %v231 = vpop.f32.mrf.mxu0
    %v232 = vadd.f32 0.0, %v231
    %233 = vdwg.mxu0
    %v234 = vadd.f32 %v160, %v232
    %v235 = vmax.f32 %v234, 0.0
    %s236 = scalar_lea.vmem [#allocation9], 16
    %237 = vst [vmem:[%s236] sm:$0xff] %v235
    %238 = vmatpush.msra.mxu0 %v86
    %239 = vmatpush.msra.mxu0 %v85
    %240 = vmatpush.msra.mxu0 %v84
    %241 = vmatpush.msra.mxu0 %v83
    %242 = vmatpush.msra.mxu0 %v82
    %243 = vmatpush.msra.mxu0 %v81
    %244 = vmatpush.msra.mxu0 %v80
    %245 = vmatpush.msra.mxu0 %v79
    %246 = vmatpush.msra.mxu0 %v78
    %247 = vmatpush.msra.mxu0 %v77
    %248 = vmatpush.msra.mxu0 %v76
    %249 = vmatpush.msra.mxu0 %v75
    %250 = vmatpush.msra.mxu0 %v74
    %251 = vmatpush.msra.mxu0 %v73
    %252 = vmatpush.msra.mxu0 %v72
    %253 = vmatpush.msra.mxu0 %v71
    %254 = vmatmul.f32.gmra.mxu0 %v235
    %v255 = vpop.f32.mrf.mxu0
    %v256 = vadd.f32 0.0, %v255
    %257 = vdwg.mxu0
    %v258 = vadd.f32 %v161, %v256
    %v259 = vmax.f32 %v258, 0.0
    %s260 = scalar_lea.vmem [#allocation9], 24
    %261 = vst [vmem:[%s260] sm:$0xff] %v259
    %262 = vmatpush.msra.mxu0 %v86
    %263 = vmatpush.msra.mxu0 %v85
    %264 = vmatpush.msra.mxu0 %v84
    %265 = vmatpush.msra.mxu0 %v83
    %266 = vmatpush.msra.mxu0 %v82
    %267 = vmatpush.msra.mxu0 %v81
    %268 = vmatpush.msra.mxu0 %v80
    %269 = vmatpush.msra.mxu0 %v79
    %270 = vmatpush.msra.mxu0 %v78
    %271 = vmatpush.msra.mxu0 %v77
    %272 = vmatpush.msra.mxu0 %v76
    %273 = vmatpush.msra.mxu0 %v75
    %274 = vmatpush.msra.mxu0 %v74
    %275 = vmatpush.msra.mxu0 %v73
    %276 = vmatpush.msra.mxu0 %v72
    %277 = vmatpush.msra.mxu0 %v71
    %278 = vmatmul.f32.gmra.mxu0 %v259
    %v279 = vpop.f32.mrf.mxu0
    %v280 = vadd.f32 0.0, %v279
    %281 = vdwg.mxu0
    %v282 = vadd.f32 %v162, %v280
    %v283 = vmax.f32 %v282, 0.0
    %s284 = scalar_lea.vmem [#allocation9], 32
    %285 = vst [vmem:[%s284] sm:$0xff] %v283
    %286 = vmatpush.msra.mxu0 %v86
    %287 = vmatpush.msra.mxu0 %v85
    %288 = vmatpush.msra.mxu0 %v84
    %289 = vmatpush.msra.mxu0 %v83
    %290 = vmatpush.msra.mxu0 %v82
    %291 = vmatpush.msra.mxu0 %v81
    %292 = vmatpush.msra.mxu0 %v80
    %293 = vmatpush.msra.mxu0 %v79
    %294 = vmatpush.msra.mxu0 %v78
    %295 = vmatpush.msra.mxu0 %v77
    %296 = vmatpush.msra.mxu0 %v76
    %297 = vmatpush.msra.mxu0 %v75
    %298 = vmatpush.msra.mxu0 %v74
    %299 = vmatpush.msra.mxu0 %v73
    %300 = vmatpush.msra.mxu0 %v72
    %301 = vmatpush.msra.mxu0 %v71
    %302 = vmatmul.f32.gmra.mxu0 %v283
    %v303 = vpop.f32.mrf.mxu0
    %v304 = vadd.f32 0.0, %v303
    %305 = vdwg.mxu0
    %v306 = vadd.f32 %v163, %v304
    %v307 = vmax.f32 %v306, 0.0
    %s308 = scalar_lea.vmem [#allocation9], 40
    %309 = vst [vmem:[%s308] sm:$0xff] %v307
    %310 = vmatpush.msra.mxu0 %v86
    %311 = vmatpush.msra.mxu0 %v85
    %312 = vmatpush.msra.mxu0 %v84
    %313 = vmatpush.msra.mxu0 %v83
    %314 = vmatpush.msra.mxu0 %v82
    %315 = vmatpush.msra.mxu0 %v81
    %316 = vmatpush.msra.mxu0 %v80
    %317 = vmatpush.msra.mxu0 %v79
    %318 = vmatpush.msra.mxu0 %v78
    %319 = vmatpush.msra.mxu0 %v77
    %320 = vmatpush.msra.mxu0 %v76
    %321 = vmatpush.msra.mxu0 %v75
    %322 = vmatpush.msra.mxu0 %v74
    %323 = vmatpush.msra.mxu0 %v73
    %324 = vmatpush.msra.mxu0 %v72
    %325 = vmatpush.msra.mxu0 %v71
    %326 = vmatmul.f32.gmra.mxu0 %v307
    %v327 = vpop.f32.mrf.mxu0
    %v328 = vadd.f32 0.0, %v327
    %329 = vdwg.mxu0
    %v330 = vadd.f32 %v164, %v328
    %v331 = vmax.f32 %v330, 0.0
    %s332 = scalar_lea.vmem [#allocation9], 48
    %333 = vst [vmem:[%s332] sm:$0xff] %v331
    %334 = vmatpush.msra.mxu0 %v86
    %335 = vmatpush.msra.mxu0 %v85
    %336 = vmatpush.msra.mxu0 %v84
    %337 = vmatpush.msra.mxu0 %v83
    %338 = vmatpush.msra.mxu0 %v82
    %339 = vmatpush.msra.mxu0 %v81
    %340 = vmatpush.msra.mxu0 %v80
    %341 = vmatpush.msra.mxu0 %v79
    %342 = vmatpush.msra.mxu0 %v78
    %343 = vmatpush.msra.mxu0 %v77
    %344 = vmatpush.msra.mxu0 %v76
    %345 = vmatpush.msra.mxu0 %v75
    %346 = vmatpush.msra.mxu0 %v74
    %347 = vmatpush.msra.mxu0 %v73
    %348 = vmatpush.msra.mxu0 %v72
    %349 = vmatpush.msra.mxu0 %v71
    %350 = vmatmul.f32.gmra.mxu0 %v331
    %v351 = vpop.f32.mrf.mxu0
    %v352 = vadd.f32 0.0, %v351
    %353 = vdwg.mxu0
    %v354 = vadd.f32 %v165, %v352
    %v355 = vmax.f32 %v354, 0.0
    %s356 = scalar_lea.vmem [#allocation9], 56
    %357 = vst [vmem:[%s356] sm:$0xff] %v355
    %358 = vst [vmem:[#allocation2] sm:$0xff] %v355
    // Predicated region
    $region35: #{tpu_custom_call.1} parent=1 // pred_check
      _
    $region36: #{tpu_custom_call.1} parent=1 // pred_check_branch
      %360 = sbr.rel (0) target = $region38
    $region37: #{tpu_custom_call.1} parent=1 // pred_region
      %362 = vsyncadd [#allocation6], 0
      %s363 = sshll.u32 [#allocation9], 4
      %s364 = int_to_ptr.vmem [resolvable:$true] %s363
      %s365 = sshll.u32 %s5, 4
      %s366 = int_to_ptr.hbm [resolvable:$true] %s365
      %371 = dma.vmem_to_hbm [thread:$0]  %s364, 1024, %s366, [#allocation6], 128, 128, 8
    $region38: #{tpu_custom_call.1} parent=1 // pred_fallthru
      _
    // Predicated region
    $region39: #{tpu_custom_call.1} parent=1 // pred_check
      _
    $region40: #{tpu_custom_call.1} parent=1 // pred_check_branch
      %373 = sbr.rel (0) target = $region42
    $region41: #{tpu_custom_call.1} parent=1 // pred_region
      %375 = dma.done [#allocation6], 1024
    $region42: #{tpu_custom_call.1} parent=1 // pred_fallthru
      _
    %376 = vsyncpa [#allocation5], 1
    %377 = vsyncpa [#allocation8], 1
    %378 = vsyncpa [#allocation6], 1

</llo_original>
